<compile_context>
chip_gen: v7x
topology: tpu7x:2x2x1
jax: 0.10.0
libtpu: 0.0.40
codegen_flags: <defaults>
</compile_context>

<pallas_src>
import math

import jax
import jax.numpy as jnp
from jax.experimental import pallas as pl
from jax.experimental.pallas import tpu as pltpu


def _broadcast_row_kernel(row_ref, out_ref):
    # row_ref : (1, L)  constant keypoints row (replicated r times, row-major)
    # out_ref : (TR, L) output slab for the current row tile
    out_ref[...] = jnp.broadcast_to(row_ref[...], out_ref.shape)


_MAX_ROW_TILE = 1024      # rows per grid step (multiple of 8)
_MAX_LANE_WIDTH = 16384   # cap on folded row width (f32 elems) -> <=64 KiB/row


def keypoints_forward(x: jax.Array, keypoints: jax.Array) -> jax.Array:
    """Replicates Keypoints.forward: keypoints expanded to [B, *keypoints.shape]."""
    b = x.shape[0]
    kp_shape = keypoints.shape
    kd = 1
    for s in kp_shape:
        kd *= int(s)

    # Fold r consecutive batch entries into the lane dimension when that makes
    # the output row width a multiple of 128 (unmasked stores). Row-major
    # contiguity is preserved, so the final reshape is free.
    r = 1
    r0 = 128 // math.gcd(kd, 128)
    if b % r0 == 0:
        r = r0
        while b % (2 * r) == 0 and (2 * r) * kd <= _MAX_LANE_WIDTH:
            r *= 2

    rows = b // r
    lane = r * kd

    # Tiny constant row (built once outside the kernel; <= _MAX_LANE_WIDTH f32).
    kp_row = keypoints.reshape(1, kd)
    if r > 1:
        kp_row = jnp.tile(kp_row, (1, r))

    # Whole batch in one step when small; otherwise tile rows in chunks of
    # _MAX_ROW_TILE (multiple of 8, so the sublane divisibility rule holds).
    tr = rows if rows <= _MAX_ROW_TILE else _MAX_ROW_TILE
    grid = (pl.cdiv(rows, tr),)

    out_flat = pl.pallas_call(
        _broadcast_row_kernel,
        out_shape=jax.ShapeDtypeStruct((rows, lane), keypoints.dtype),
        grid_spec=pltpu.PrefetchScalarGridSpec(
            num_scalar_prefetch=0,
            grid=grid,
            in_specs=[
                # Constant block index -> fetched once, never re-DMA'd.
                pl.BlockSpec((1, lane), lambda i: (0, 0)),
            ],
            out_specs=pl.BlockSpec((tr, lane), lambda i: (i, 0)),
        ),
        compiler_params=pltpu.CompilerParams(
            dimension_semantics=("parallel",),
        ),
    )(kp_row)

    return out_flat.reshape(b, *kp_shape)


if __name__ == "__main__":
    # Deterministic keypoint template (what would be passed to __init__ as a
    # list of lists of floats), e.g. 16 keypoints with (x, y, z) coordinates.
    K, D = 16, 3
    keypoints_list = [
        [float(i) * 0.1, float(i) * 0.2 - 1.0, float(i % 4) * 0.25]
        for i in range(K)
    ]
    keypoints = jnp.asarray(keypoints_list, dtype=jnp.float32)

    # Example input — values are irrelevant, only the batch dim is used.
    key = jax.random.PRNGKey(0)
    x = jax.random.normal(key, (2, 4, 16, 16), dtype=jnp.float32)

    out = keypoints_forward(x, keypoints)
    out = jax.block_until_ready(out)

    # Reference check: expand == broadcast over batch.
    ref = jnp.broadcast_to(keypoints[None], (x.shape[0], K, D))
    assert out.shape == (x.shape[0], K, D), out.shape
    assert out.dtype == jnp.float32, out.dtype
    assert jnp.array_equal(out, ref), "mismatch vs. reference broadcast"

    # Also exercise a larger, fold-friendly batch (B % (128/gcd(K*D,128)) == 0)
    # to cover the lane-dense path.
    x_big = jnp.zeros((64, 4, 16, 16), dtype=jnp.float32)
    out_big = jax.block_until_ready(keypoints_forward(x_big, keypoints))
    ref_big = jnp.broadcast_to(keypoints[None], (64, K, D))
    assert jnp.array_equal(out_big, ref_big), "mismatch on folded path"

    print("KERNEL_OK")
</pallas_src>

<mosaic_0001>
module attributes {stable_mosaic.version = 11 : i64} {
  func.func @_broadcast_row_kernel(%arg0: i32, %arg1: memref<1x48xf32, #tpu.memory_space<vmem>>, %arg2: memref<2x48xf32, #tpu.memory_space<vmem>>) attributes {dimension_semantics = [#tpu.dimension_semantics<parallel>], iteration_bounds = array<i64: 1>, scalar_prefetch = 0 : i64, scratch_operands = 0 : i64, tpu.core_type = #tpu.core_type<tc>, window_params = [{pipeline_mode = #tpu.pipeline_mode<synchronous>, transform_indices = @transform_0, window_bounds = array<i64: 1, 48>}, {transform_indices = @transform_1, window_bounds = array<i64: 2, 48>}]} {
    %c0 = arith.constant 0 : index
    %c0_0 = arith.constant 0 : index
    %0 = vector.load %arg1[%c0, %c0_0] : memref<1x48xf32, #tpu.memory_space<vmem>>, vector<1x48xf32>
    %1 = vector.shape_cast %0 : vector<1x48xf32> to vector<1x48xf32>
    %2 = vector.broadcast %1 : vector<1x48xf32> to vector<2x48xf32>
    %c0_1 = arith.constant 0 : index
    %c0_2 = arith.constant 0 : index
    %3 = vector.load %arg2[%c0_1, %c0_2] : memref<2x48xf32, #tpu.memory_space<vmem>>, vector<2x48xf32>
    tpu.vector_store %arg2[%c0_1, %c0_2], %2 {strides = array<i32>} : memref<2x48xf32, #tpu.memory_space<vmem>>, vector<2x48xf32>,
    return
  }
  func.func @transform_0(%arg0: i32) -> (i32, i32) {
    %c0_i32 = arith.constant 0 : i32
    %c0_i32_0 = arith.constant 0 : i32
    %c0_i32_1 = arith.constant 0 : i32
    return %c0_i32, %c0_i32_0 : i32, i32
  }
  func.func @transform_1(%arg0: i32) -> (i32, i32) {
    %c0_i32 = arith.constant 0 : i32
    %c0_i32_0 = arith.constant 0 : i32
    return %arg0, %c0_i32 : i32, i32
  }
}

</mosaic_0001>

<llo_original>
// kernel: tpu_custom_call.1
$region0: #{tpu_custom_call.1}
  #allocation0 [shape = 'u32[]', space=smem, size = 0x4, offset = 0x4, fixed_abs, tag = 'smem constant byte address 0x4 - core index']
  #allocation1 [shape = 'u32[144,128]{1,0:T(1,128)}', space=vmem, size = 0x12000, scoped, tag = 'internal scratch']
  %s0 = inlined_call_operand.hbm [shape: f32[1,48], index: 0, kind: input, shape index: {}]
  %s1 = inlined_call_operand.hbm [shape: f32[2,48], index: 1, kind: output, shape index: {}]
  %s2 = sld [smem:[#allocation0]]
  $region18: #{tpu_custom_call.1} parent=0
    _
  %s4 = ssub.s32 1, %s2
  %s5 = scalar_select 0, %s4, %s2
  $region1: #{tpu_custom_call.1} parent=0
    #allocation2 [shape = 'u8[512]{0}', space=vmem, size = 0x400, scoped, tag = 'input window, operand 0, single buffered']
    #allocation3 [shape = 's32[1]{0}', space=sflag, size = 0x4, scoped, tag = 'scoped memory for tpu_custom_call.1']
    #allocation4 [shape = 's32[1]{0}', space=sflag, size = 0x4, scoped, tag = 'scoped memory for tpu_custom_call.1']
    #allocation5 [shape = 'u8[1024]{0}', space=vmem, size = 0x400, scoped, tag = 'output window, operand 0, single buffered']
    %6 = vsyncpa [#allocation3], 0
    %7 = vsyncpa [#allocation4], 0
    // Predicated region
    $region2: #{tpu_custom_call.1} parent=1 // pred_check
      _
    $region3: #{tpu_custom_call.1} parent=1 // pred_check_branch
      %9 = sbr.rel (0) target = $region5
    $region4: #{tpu_custom_call.1} parent=1 // pred_region
      %s11 = ssub.s32 16, 16
      %12 = vsyncadd [#allocation3], %s11
      %s14 = sshll.u32 [#allocation2], 4
      %s15 = int_to_ptr.vmem [resolvable:$true] %s14
      %17 = dma.hbm_to_vmem [thread:$0]  %s0, 16, %s15, [#allocation3]
    $region5: #{tpu_custom_call.1} parent=1 // pred_fallthru
      _
    // Predicated region
    $region6: #{tpu_custom_call.1} parent=1 // pred_check
      _
    $region7: #{tpu_custom_call.1} parent=1 // pred_check_branch
      %19 = sbr.rel (0) target = $region9
    $region8: #{tpu_custom_call.1} parent=1 // pred_region
      %20 = dma.done [#allocation3], 16
    $region9: #{tpu_custom_call.1} parent=1 // pred_fallthru
      _
    %v21 = vld [vmem:[#allocation2] sm:$0x1]
    %v23 = vlaneseq
    %v24 = vshrl.u32 %v23, 7
    %v25 = vsub.s32 0, %v24
    %v26 = vrot.slane %v21, %v25
    %vm28 = vcmask 386048
    %29 = vst.msk [vmem:[#allocation5] sm:$0x3] %vm28, %v26
    // Predicated region
    $region10: #{tpu_custom_call.1} parent=1 // pred_check
      _
    $region11: #{tpu_custom_call.1} parent=1 // pred_check_branch
      %31 = sbr.rel (0) target = $region13
    $region12: #{tpu_custom_call.1} parent=1 // pred_region
      %s33 = ssub.s32 32, 32
      %34 = vsyncadd [#allocation4], %s33
      %s36 = sshll.u32 [#allocation5], 4
      %s37 = int_to_ptr.vmem [resolvable:$true] %s36
      %39 = dma.vmem_to_hbm [thread:$0]  %s37, 32, %s1, [#allocation4]
    $region13: #{tpu_custom_call.1} parent=1 // pred_fallthru
      _
    // Predicated region
    $region14: #{tpu_custom_call.1} parent=1 // pred_check
      _
    $region15: #{tpu_custom_call.1} parent=1 // pred_check_branch
      %41 = sbr.rel (0) target = $region17
    $region16: #{tpu_custom_call.1} parent=1 // pred_region
      %42 = dma.done [#allocation4], 32
    $region17: #{tpu_custom_call.1} parent=1 // pred_fallthru
      _
    %43 = vsyncpa [#allocation3], 1
    %44 = vsyncpa [#allocation4], 1

</llo_original>
